<compile_context>
chip_gen: v7x
topology: tpu7x:2x2x1
jax: 0.10.0
libtpu: 0.0.40
codegen_flags: <defaults>
</compile_context>

<pallas_src>
import jax
import jax.numpy as jnp
from jax.experimental import pallas as pl
from jax.experimental.pallas import tpu as pltpu


def _cfc_seq_kernel(x_ref, hx0_ref, wx_ref, blin_ref, adj_ref, wout_ref,
                    bout_ref, out_ref, hx_scr):
    """One timestep of the WiredCfC recurrence for one batch tile."""
    # Time axis (grid axis 1) is innermost: init the recurrent state once per
    # batch tile.
    @pl.when(pl.program_id(1) == 0)
    def _():
        hx_scr[...] = hx0_ref[...]

    U = adj_ref.shape[1]
    x = x_ref[...]                        # (bb, D)  compute dtype (bf16 / f32)
    hx = hx_scr[...]                      # (bb, U)

    # Fused x-projections: one MXU call gives [x @ W_lin | x @ S].
    xw = jnp.dot(x, wx_ref[...], preferred_element_type=jnp.float32)     # (bb, 2U) f32
    rec = jnp.dot(hx, adj_ref[...], preferred_element_type=jnp.float32)  # (bb, U)  f32

    h = jnp.maximum(xw[:, :U] + blin_ref[...].astype(jnp.float32) + rec, 0.0)
    h = jnp.maximum(h + xw[:, U:], 0.0)

    # Output projection (mode='default'); operands cast back to weight dtype so
    # the MXU runs at full (bf16) rate, accumulation stays f32.
    out = jnp.dot(h.astype(wout_ref.dtype), wout_ref[...],
                  preferred_element_type=jnp.float32)
    out = out + bout_ref[...].astype(jnp.float32)

    out_ref[...] = out.astype(out_ref.dtype)
    # Module semantics: the projected output is the next hidden state (O == U).
    hx_scr[...] = out[:, :U].astype(hx_scr.dtype)


def wired_cfc_sequence(x_seq, hx0, params, *, block_b=None):
    """Run the WiredCfCCell recurrence over a sequence in one fused kernel.

    x_seq: (T, B, D), hx0: (B, U).  Returns out_seq: (T, B, O).
    out_seq[t] is the module output (and next hidden state) at step t.
    """
    T, B, D = x_seq.shape
    U = hx0.shape[1]
    O = params["w_out"].shape[1]
    # The module returns (h, h): the output projection is the next hidden
    # state, so the fused recurrence requires output_dim == units.
    assert O == U, "WiredCfCCell's (h, h) recurrence requires output_dim == units"
    assert params["w_lin"].shape == (D, U)
    assert params["adj"].shape == (U, U)
    assert params["sadj"].shape == (D, U)

    cdtype = x_seq.dtype

    # One-time host-side weight packing: [W_lin | S]  -> single MXU call for
    # both x-projections each step.
    wx = jnp.concatenate([params["w_lin"], params["sadj"]], axis=1)   # (D, 2U)

    # Lane-dense output stores: pad the output feature dim to a multiple of 128.
    O_pad = ((O + 127) // 128) * 128
    w_out, b_out = params["w_out"], params["b_out"]
    if O_pad != O:
        w_out = jnp.pad(w_out, ((0, 0), (0, O_pad - O)))
        b_out = jnp.pad(b_out, ((0, 0), (0, O_pad - O)))

    if block_b is None:
        # Give the grid >=2 "parallel" points (both v7x TensorCores) when the
        # batch is large enough to keep sublane-friendly tiles.
        block_b = B // 2 if B % 32 == 0 else B
    assert B % block_b == 0
    grid = (B // block_b, T)

    # Weights/biases: constant block index -> DMA'd once, stay VMEM-resident.
    def full(a):
        return pl.BlockSpec(a.shape, lambda b, t, _nd=a.ndim: (0,) * _nd)

    itemsize = jnp.dtype(cdtype).itemsize
    flops = 2 * T * B * (D * 2 * U + U * U + U * O_pad)
    bytes_accessed = itemsize * (
        x_seq.size + hx0.size + wx.size + params["b_lin"].size
        + params["adj"].size + w_out.size + b_out.size + T * B * O_pad)

    out = pl.pallas_call(
        _cfc_seq_kernel,
        out_shape=jax.ShapeDtypeStruct((T, B, O_pad), cdtype),
        grid_spec=pltpu.PrefetchScalarGridSpec(
            num_scalar_prefetch=0,
            grid=grid,
            in_specs=[
                pl.BlockSpec((None, block_b, D), lambda b, t: (t, b, 0)),  # x_t tile
                pl.BlockSpec((block_b, U), lambda b, t: (b, 0)),           # hx0 tile
                full(wx),                  # [W_lin | S]
                full(params["b_lin"]),
                full(params["adj"]),
                full(w_out),
                full(b_out),
            ],
            out_specs=pl.BlockSpec((None, block_b, O_pad), lambda b, t: (t, b, 0)),
            scratch_shapes=[pltpu.VMEM((block_b, U), cdtype)],   # recurrent state
        ),
        compiler_params=pltpu.CompilerParams(
            dimension_semantics=("parallel", "arbitrary"),
            vmem_limit_bytes=32 * 1024 * 1024,
        ),
        cost_estimate=pl.CostEstimate(flops=flops, transcendentals=0,
                                      bytes_accessed=bytes_accessed),
    )(x_seq, hx0, wx, params["b_lin"], params["adj"], w_out, b_out)

    return out[..., :O]


def wired_cfc_cell(x, hx, params, ts=1.0, *, block_b=None):
    """Single WiredCfCCell step (mode='default'). Returns (h, h) like the module.

    `ts` is unused by the PyTorch module in mode='default' and is ignored here.
    """
    out = wired_cfc_sequence(x[None], hx, params, block_b=block_b)[0]
    return out, out


# --------------------------- pure-JAX reference ---------------------------- #

def reference_step(x, hx, p):
    """Exact module math, with the same dtype/cast structure as the kernel."""
    f32 = jnp.float32
    cd = x.dtype
    lin = jnp.dot(x, p["w_lin"], preferred_element_type=f32) + p["b_lin"].astype(f32)
    rec = jnp.dot(hx, p["adj"], preferred_element_type=f32)
    sens = jnp.dot(x, p["sadj"], preferred_element_type=f32)
    h = jnp.maximum(lin + rec, 0.0)
    h = jnp.maximum(h + sens, 0.0)
    out = jnp.dot(h.astype(cd), p["w_out"], preferred_element_type=f32)
    out = (out + p["b_out"].astype(f32)).astype(cd)
    return out, out


def reference_sequence(x_seq, hx0, p):
    def step(hx, x_t):
        out, new_h = reference_step(x_t, hx, p)
        return new_h, out
    _, outs = jax.lax.scan(step, hx0, x_seq)
    return outs


def make_params(key, input_size, units, output_dim, dtype=jnp.float32):
    ks = jax.random.split(key, 6)
    s_lin = 1.0 / jnp.sqrt(input_size)
    s_out = 1.0 / jnp.sqrt(units)
    p = {
        # nn.Linear(input_size, units): weight stored transposed (D, U)
        "w_lin": jax.random.uniform(ks[0], (input_size, units), jnp.float32, -s_lin, s_lin),
        "b_lin": jax.random.uniform(ks[1], (1, units), jnp.float32, -s_lin, s_lin),
        # wiring adjacency matrices
        "adj": jax.random.normal(ks[2], (units, units), jnp.float32) * 0.1,
        "sadj": jax.random.normal(ks[3], (input_size, units), jnp.float32) * 0.1,
        # nn.Linear(units, output_dim)
        "w_out": jax.random.uniform(ks[4], (units, output_dim), jnp.float32, -s_out, s_out),
        "b_out": jax.random.uniform(ks[5], (1, output_dim), jnp.float32, -s_out, s_out),
    }
    return jax.tree_util.tree_map(lambda a: a.astype(dtype), p)


if __name__ == "__main__":
    key = jax.random.PRNGKey(0)
    k_x, k_h, k_p, k_xs = jax.random.split(key, 4)

    # Shapes consistent with the module: wiring = WiringRevised(units=256).
    batch, input_size, units = 8, 16, 256
    output_dim = units          # wiring.output_dim falls back to units
    seq_len = 8

    # ---- check 1: single step, float32 (module forward semantics) ----
    p32 = make_params(k_p, input_size, units, output_dim, jnp.float32)
    x = jax.random.normal(k_x, (batch, input_size), jnp.float32)
    hx = jax.random.normal(k_h, (batch, units), jnp.float32)

    out, new_h = wired_cfc_cell(x, hx, p32)
    jax.block_until_ready(out)
    ref_out, _ = reference_step(x, hx, p32)
    assert out.shape == (batch, output_dim)
    assert jnp.allclose(out, ref_out, atol=2e-2, rtol=2e-2), "single-step mismatch"
    assert jnp.allclose(new_h, ref_out, atol=2e-2, rtol=2e-2), "state mismatch"

    # ---- check 2: fused T-step recurrence, bf16 operands / f32 accumulation ----
    pbf = jax.tree_util.tree_map(lambda a: a.astype(jnp.bfloat16), p32)
    x_seq = jax.random.normal(
        k_xs, (seq_len, batch, input_size), jnp.float32).astype(jnp.bfloat16)
    hx_bf = hx.astype(jnp.bfloat16)

    out_seq = wired_cfc_sequence(x_seq, hx_bf, pbf)
    jax.block_until_ready(out_seq)
    ref_seq = reference_sequence(x_seq, hx_bf, pbf)
    assert out_seq.shape == (seq_len, batch, output_dim)
    assert jnp.allclose(out_seq.astype(jnp.float32), ref_seq.astype(jnp.float32),
                        atol=5e-2, rtol=5e-2), "sequence mismatch"

    # TODO(synk): only mode='default' is implemented (matches the given module);
    # other CfC modes / the unused `ts` argument are not modelled.
    print("KERNEL_OK")
</pallas_src>

<mosaic_0001>
module attributes {stable_mosaic.version = 11 : i64} {
  func.func @_cfc_seq_kernel(%arg0: i32, %arg1: i32, %arg2: memref<1x8x16xf32, #tpu.memory_space<vmem>>, %arg3: memref<8x256xf32, #tpu.memory_space<vmem>>, %arg4: memref<16x512xf32, #tpu.memory_space<vmem>>, %arg5: memref<1x256xf32, #tpu.memory_space<vmem>>, %arg6: memref<256x256xf32, #tpu.memory_space<vmem>>, %arg7: memref<256x256xf32, #tpu.memory_space<vmem>>, %arg8: memref<1x256xf32, #tpu.memory_space<vmem>>, %arg9: memref<1x8x256xf32, #tpu.memory_space<vmem>>, %arg10: memref<8x256xf32, #tpu.memory_space<vmem>>) attributes {dimension_semantics = [#tpu.dimension_semantics<parallel>, #tpu.dimension_semantics<arbitrary>], iteration_bounds = array<i64: 1, 1>, scalar_prefetch = 0 : i64, scratch_operands = 1 : i64, tpu.core_type = #tpu.core_type<tc>, window_params = [{transform_indices = @transform_0, window_bounds = array<i64: 1, 8, 16>}, {transform_indices = @transform_1, window_bounds = array<i64: 8, 256>}, {pipeline_mode = #tpu.pipeline_mode<synchronous>, transform_indices = @transform_2, window_bounds = array<i64: 16, 512>}, {pipeline_mode = #tpu.pipeline_mode<synchronous>, transform_indices = @transform_3, window_bounds = array<i64: 1, 256>}, {pipeline_mode = #tpu.pipeline_mode<synchronous>, transform_indices = @transform_4, window_bounds = array<i64: 256, 256>}, {pipeline_mode = #tpu.pipeline_mode<synchronous>, transform_indices = @transform_5, window_bounds = array<i64: 256, 256>}, {pipeline_mode = #tpu.pipeline_mode<synchronous>, transform_indices = @transform_6, window_bounds = array<i64: 1, 256>}, {transform_indices = @transform_7, window_bounds = array<i64: 1, 8, 256>}]} {
    %c0_i32 = arith.constant 0 : i32
    %0 = arith.cmpi eq, %arg1, %c0_i32 : i32
    %1 = arith.extui %0 : i1 to i32
    %c0_i32_0 = arith.constant 0 : i32
    %2 = arith.cmpi ne, %1, %c0_i32_0 : i32
    scf.if %2 {
      %c0_24 = arith.constant 0 : index
      %c0_25 = arith.constant 0 : index
      %30 = vector.load %arg3[%c0_24, %c0_25] : memref<8x256xf32, #tpu.memory_space<vmem>>, vector<8x256xf32>
      %c0_26 = arith.constant 0 : index
      %c0_27 = arith.constant 0 : index
      %31 = vector.load %arg10[%c0_26, %c0_27] : memref<8x256xf32, #tpu.memory_space<vmem>>, vector<8x256xf32>
      tpu.vector_store %arg10[%c0_26, %c0_27], %30 {strides = array<i32>} : memref<8x256xf32, #tpu.memory_space<vmem>>, vector<8x256xf32>,
    } else {
    }
    %c0 = arith.constant 0 : index
    %c0_1 = arith.constant 0 : index
    %c0_2 = arith.constant 0 : index
    %3 = vector.load %arg2[%c0, %c0_1, %c0_2] : memref<1x8x16xf32, #tpu.memory_space<vmem>>, vector<1x8x16xf32>
    %4 = vector.shape_cast %3 : vector<1x8x16xf32> to vector<8x16xf32>
    %c0_3 = arith.constant 0 : index
    %c0_4 = arith.constant 0 : index
    %5 = vector.load %arg10[%c0_3, %c0_4] : memref<8x256xf32, #tpu.memory_space<vmem>>, vector<8x256xf32>
    %c0_5 = arith.constant 0 : index
    %c0_6 = arith.constant 0 : index
    %6 = vector.load %arg4[%c0_5, %c0_6] : memref<16x512xf32, #tpu.memory_space<vmem>>, vector<16x512xf32>
    %cst = arith.constant dense<0.000000e+00> : vector<8x512xf32>
    %7 = tpu.matmul %4, %6, %cst {dimension_numbers = #tpu.dot_dimension_numbers<[1], [0], [0], [1], [0, 0, 1, 1], [], []>} : vector<8x16xf32>, vector<16x512xf32>, vector<8x512xf32> -> vector<8x512xf32>
    %c0_7 = arith.constant 0 : index
    %c0_8 = arith.constant 0 : index
    %8 = vector.load %arg6[%c0_7, %c0_8] : memref<256x256xf32, #tpu.memory_space<vmem>>, vector<256x256xf32>
    %cst_9 = arith.constant dense<0.000000e+00> : vector<8x256xf32>
    %9 = tpu.matmul %5, %8, %cst_9 {dimension_numbers = #tpu.dot_dimension_numbers<[1], [0], [0], [1], [0, 0, 1, 1], [], []>} : vector<8x256xf32>, vector<256x256xf32>, vector<8x256xf32> -> vector<8x256xf32>
    %10 = vector.extract_strided_slice %7 {offsets = [0, 0], sizes = [8, 256], strides = [1, 1]} : vector<8x512xf32> to vector<8x256xf32>
    %c0_10 = arith.constant 0 : index
    %c0_11 = arith.constant 0 : index
    %11 = vector.load %arg5[%c0_10, %c0_11] : memref<1x256xf32, #tpu.memory_space<vmem>>, vector<1x256xf32>
    %12 = vector.broadcast %11 : vector<1x256xf32> to vector<8x256xf32>
    %13 = arith.addf %10, %12 : vector<8x256xf32>
    %14 = arith.addf %13, %9 : vector<8x256xf32>
    %cst_12 = arith.constant 0.000000e+00 : f32
    %15 = vector.broadcast %cst_12 : f32 to vector<8x256xf32>
    %16 = arith.maximumf %14, %15 : vector<8x256xf32>
    %17 = vector.extract_strided_slice %7 {offsets = [0, 256], sizes = [8, 256], strides = [1, 1]} : vector<8x512xf32> to vector<8x256xf32>
    %18 = arith.addf %16, %17 : vector<8x256xf32>
    %cst_13 = arith.constant 0.000000e+00 : f32
    %19 = vector.broadcast %cst_13 : f32 to vector<8x256xf32>
    %20 = arith.maximumf %18, %19 : vector<8x256xf32>
    %c0_14 = arith.constant 0 : index
    %c0_15 = arith.constant 0 : index
    %21 = vector.load %arg7[%c0_14, %c0_15] : memref<256x256xf32, #tpu.memory_space<vmem>>, vector<256x256xf32>
    %cst_16 = arith.constant dense<0.000000e+00> : vector<8x256xf32>
    %22 = tpu.matmul %20, %21, %cst_16 {dimension_numbers = #tpu.dot_dimension_numbers<[1], [0], [0], [1], [0, 0, 1, 1], [], []>} : vector<8x256xf32>, vector<256x256xf32>, vector<8x256xf32> -> vector<8x256xf32>
    %c0_17 = arith.constant 0 : index
    %c0_18 = arith.constant 0 : index
    %23 = vector.load %arg8[%c0_17, %c0_18] : memref<1x256xf32, #tpu.memory_space<vmem>>, vector<1x256xf32>
    %24 = vector.broadcast %23 : vector<1x256xf32> to vector<8x256xf32>
    %25 = arith.addf %22, %24 : vector<8x256xf32>
    %c0_19 = arith.constant 0 : index
    %c0_20 = arith.constant 0 : index
    %c0_21 = arith.constant 0 : index
    %26 = vector.load %arg9[%c0_19, %c0_20, %c0_21] : memref<1x8x256xf32, #tpu.memory_space<vmem>>, vector<1x8x256xf32>
    %27 = vector.shape_cast %26 : vector<1x8x256xf32> to vector<8x256xf32>
    %28 = vector.shape_cast %25 : vector<8x256xf32> to vector<1x8x256xf32>
    tpu.vector_store %arg9[%c0_19, %c0_20, %c0_21], %28 {strides = array<i32>} : memref<1x8x256xf32, #tpu.memory_space<vmem>>, vector<1x8x256xf32>,
    %c0_22 = arith.constant 0 : index
    %c0_23 = arith.constant 0 : index
    %29 = vector.load %arg10[%c0_22, %c0_23] : memref<8x256xf32, #tpu.memory_space<vmem>>, vector<8x256xf32>
    tpu.vector_store %arg10[%c0_22, %c0_23], %25 {strides = array<i32>} : memref<8x256xf32, #tpu.memory_space<vmem>>, vector<8x256xf32>,
    return
  }
  func.func @transform_0(%arg0: i32, %arg1: i32) -> (i32, i32, i32) {
    %c0_i32 = arith.constant 0 : i32
    %c0_i32_0 = arith.constant 0 : i32
    return %arg1, %arg0, %c0_i32 : i32, i32, i32
  }
  func.func @transform_1(%arg0: i32, %arg1: i32) -> (i32, i32) {
    %c0_i32 = arith.constant 0 : i32
    %c0_i32_0 = arith.constant 0 : i32
    return %arg0, %c0_i32 : i32, i32
  }
  func.func @transform_2(%arg0: i32, %arg1: i32) -> (i32, i32) {
    %c0_i32 = arith.constant 0 : i32
    %c0_i32_0 = arith.constant 0 : i32
    %c0_i32_1 = arith.constant 0 : i32
    return %c0_i32, %c0_i32_0 : i32, i32
  }
  func.func @transform_3(%arg0: i32, %arg1: i32) -> (i32, i32) {
    %c0_i32 = arith.constant 0 : i32
    %c0_i32_0 = arith.constant 0 : i32
    %c0_i32_1 = arith.constant 0 : i32
    return %c0_i32, %c0_i32_0 : i32, i32
  }
  func.func @transform_4(%arg0: i32, %arg1: i32) -> (i32, i32) {
    %c0_i32 = arith.constant 0 : i32
    %c0_i32_0 = arith.constant 0 : i32
    %c0_i32_1 = arith.constant 0 : i32
    return %c0_i32, %c0_i32_0 : i32, i32
  }
  func.func @transform_5(%arg0: i32, %arg1: i32) -> (i32, i32) {
    %c0_i32 = arith.constant 0 : i32
    %c0_i32_0 = arith.constant 0 : i32
    %c0_i32_1 = arith.constant 0 : i32
    return %c0_i32, %c0_i32_0 : i32, i32
  }
  func.func @transform_6(%arg0: i32, %arg1: i32) -> (i32, i32) {
    %c0_i32 = arith.constant 0 : i32
    %c0_i32_0 = arith.constant 0 : i32
    %c0_i32_1 = arith.constant 0 : i32
    return %c0_i32, %c0_i32_0 : i32, i32
  }
  func.func @transform_7(%arg0: i32, %arg1: i32) -> (i32, i32, i32) {
    %c0_i32 = arith.constant 0 : i32
    %c0_i32_0 = arith.constant 0 : i32
    return %arg1, %arg0, %c0_i32 : i32, i32, i32
  }
}

</mosaic_0001>

<llo_original>
// kernel: tpu_custom_call.1
$region0: #{tpu_custom_call.1}
  #allocation0 [shape = 'u32[]', space=smem, size = 0x4, offset = 0x4, fixed_abs, tag = 'smem constant byte address 0x4 - core index']
  #allocation1 [shape = 'u32[144,128]{1,0:T(1,128)}', space=vmem, size = 0x12000, scoped, tag = 'internal scratch']
  #allocation2 [shape = 'f32[8,256]{1,0:T(8,128)}', space=vmem, size = 0x2000, scoped, tag = 'scratch operand']
  %s0 = inlined_call_operand.hbm [shape: f32[1,8,16], index: 0, kind: input, shape index: {}]
  %s1 = inlined_call_operand.hbm [shape: f32[8,256], index: 1, kind: input, shape index: {}]
  %s2 = inlined_call_operand.hbm [shape: f32[16,512], index: 2, kind: input, shape index: {}]
  %s3 = inlined_call_operand.vmem [shape: f32[1,256], index: 3, kind: input, shape index: {}]
  %s4 = inlined_call_operand.hbm [shape: f32[256,256], index: 4, kind: input, shape index: {}]
  %s5 = inlined_call_operand.hbm [shape: f32[256,256], index: 5, kind: input, shape index: {}]
  %s6 = inlined_call_operand.vmem [shape: f32[1,256], index: 6, kind: input, shape index: {}]
  %s7 = inlined_call_operand.hbm [shape: f32[1,8,256], index: 7, kind: output, shape index: {}]
  %s8 = sld [smem:[#allocation0]]
  $region62: #{tpu_custom_call.1} parent=0
    _
  %s10 = ssub.s32 1, %s8
  %s11 = scalar_select 0, %s10, %s8
  $region1: #{tpu_custom_call.1} parent=0
    #allocation3 [shape = 'u8[4096]{0}', space=vmem, size = 0x1000, scoped, tag = 'input window, operand 0, single buffered']
    #allocation4 [shape = 's32[1]{0}', space=sflag, size = 0x4, scoped, tag = 'scoped memory for tpu_custom_call.1']
    #allocation5 [shape = 's32[1]{0}', space=sflag, size = 0x4, scoped, tag = 'scoped memory for tpu_custom_call.1']
    #allocation6 [shape = 'u8[8192]{0}', space=vmem, size = 0x2000, scoped, tag = 'input window, operand 1, single buffered']
    #allocation7 [shape = 's32[1]{0}', space=sflag, size = 0x4, scoped, tag = 'scoped memory for tpu_custom_call.1']
    #allocation8 [shape = 'u8[32768]{0}', space=vmem, size = 0x8000, scoped, tag = 'input window, operand 2, single buffered']
    #allocation9 [shape = 'u8[262144]{0}', space=vmem, size = 0x40000, scoped, tag = 'input window, operand 4, single buffered']
    #allocation10 [shape = 's32[1]{0}', space=sflag, size = 0x4, scoped, tag = 'scoped memory for tpu_custom_call.1']
    #allocation11 [shape = 'u8[262144]{0}', space=vmem, size = 0x40000, scoped, tag = 'input window, operand 5, single buffered']
    #allocation12 [shape = 'u8[8192]{0}', space=vmem, size = 0x2000, scoped, tag = 'output window, operand 0, single buffered']
    %12 = vsyncpa [#allocation4], 0
    %13 = vsyncpa [#allocation7], 0
    %14 = vsyncpa [#allocation10], 0
    %15 = vsyncpa [#allocation5], 0
    // Predicated region
    $region2: #{tpu_custom_call.1} parent=1 // pred_check
      _
    $region3: #{tpu_custom_call.1} parent=1 // pred_check_branch
      %17 = sbr.rel (0) target = $region5
    $region4: #{tpu_custom_call.1} parent=1 // pred_region
      %s19 = ssub.s32 128, 128
      %20 = vsyncadd [#allocation4], %s19
      %s22 = sshll.u32 [#allocation3], 4
      %s23 = int_to_ptr.vmem [resolvable:$true] %s22
      %25 = dma.hbm_to_vmem [thread:$0]  %s0, 128, %s23, [#allocation4]
    $region5: #{tpu_custom_call.1} parent=1 // pred_fallthru
      _
    // Predicated region
    $region6: #{tpu_custom_call.1} parent=1 // pred_check
      _
    $region7: #{tpu_custom_call.1} parent=1 // pred_check_branch
      %27 = sbr.rel (0) target = $region9
    $region8: #{tpu_custom_call.1} parent=1 // pred_region
      %s29 = ssub.s32 256, 256
      %30 = vsyncadd [#allocation7], %s29
      %s32 = sshll.u32 [#allocation6], 4
      %s33 = int_to_ptr.vmem [resolvable:$true] %s32
      %35 = dma.hbm_to_vmem [thread:$0]  %s1, 256, %s33, [#allocation7]
    $region9: #{tpu_custom_call.1} parent=1 // pred_fallthru
      _
    // Predicated region
    $region10: #{tpu_custom_call.1} parent=1 // pred_check
      _
    $region11: #{tpu_custom_call.1} parent=1 // pred_check_branch
      %37 = sbr.rel (0) target = $region13
    $region12: #{tpu_custom_call.1} parent=1 // pred_region
      %s39 = ssub.s32 1024, 1024
      %40 = vsyncadd [#allocation7], %s39
      %s41 = sshll.u32 [#allocation8], 4
      %s42 = int_to_ptr.vmem [resolvable:$true] %s41
      %47 = dma.hbm_to_vmem [thread:$0]  %s2, 1024, %s42, [#allocation7], 512, 512, 32
    $region13: #{tpu_custom_call.1} parent=1 // pred_fallthru
      _
    // Predicated region
    $region14: #{tpu_custom_call.1} parent=1 // pred_check
      _
    $region15: #{tpu_custom_call.1} parent=1 // pred_check_branch
      %49 = sbr.rel (0) target = $region17
    $region16: #{tpu_custom_call.1} parent=1 // pred_region
      _
    $region17: #{tpu_custom_call.1} parent=1 // pred_fallthru
      _
    // Predicated region
    $region18: #{tpu_custom_call.1} parent=1 // pred_check
      _
    $region19: #{tpu_custom_call.1} parent=1 // pred_check_branch
      %51 = sbr.rel (0) target = $region21
    $region20: #{tpu_custom_call.1} parent=1 // pred_region
      %s53 = ssub.s32 8192, 8192
      %54 = vsyncadd [#allocation10], %s53
      %s55 = sshll.u32 [#allocation9], 4
      %s56 = int_to_ptr.vmem [resolvable:$true] %s55
      %61 = dma.hbm_to_vmem [thread:$0]  %s4, 8192, %s56, [#allocation10], 256, 256, 16
    $region21: #{tpu_custom_call.1} parent=1 // pred_fallthru
      _
    // Predicated region
    $region22: #{tpu_custom_call.1} parent=1 // pred_check
      _
    $region23: #{tpu_custom_call.1} parent=1 // pred_check_branch
      %63 = sbr.rel (0) target = $region25
    $region24: #{tpu_custom_call.1} parent=1 // pred_region
      %s65 = ssub.s32 8192, 8192
      %66 = vsyncadd [#allocation10], %s65
      %s67 = sshll.u32 [#allocation11], 4
      %s68 = int_to_ptr.vmem [resolvable:$true] %s67
      %73 = dma.hbm_to_vmem [thread:$0]  %s5, 8192, %s68, [#allocation10], 256, 256, 16
    $region25: #{tpu_custom_call.1} parent=1 // pred_fallthru
      _
    // Predicated region
    $region26: #{tpu_custom_call.1} parent=1 // pred_check
      _
    $region27: #{tpu_custom_call.1} parent=1 // pred_check_branch
      %75 = sbr.rel (0) target = $region29
    $region28: #{tpu_custom_call.1} parent=1 // pred_region
      _
    $region29: #{tpu_custom_call.1} parent=1 // pred_fallthru
      _
    // Predicated region
    $region30: #{tpu_custom_call.1} parent=1 // pred_check
      _
    $region31: #{tpu_custom_call.1} parent=1 // pred_check_branch
      %77 = sbr.rel (0) target = $region33
    $region32: #{tpu_custom_call.1} parent=1 // pred_region
      %78 = dma.done [#allocation4], 128
    $region33: #{tpu_custom_call.1} parent=1 // pred_fallthru
      _
    // Predicated region
    $region34: #{tpu_custom_call.1} parent=1 // pred_check
      _
    $region35: #{tpu_custom_call.1} parent=1 // pred_check_branch
      %80 = sbr.rel (0) target = $region37
    $region36: #{tpu_custom_call.1} parent=1 // pred_region
      %81 = dma.done [#allocation7], 256
    $region37: #{tpu_custom_call.1} parent=1 // pred_fallthru
      _
    // Predicated region
    $region38: #{tpu_custom_call.1} parent=1 // pred_check
      _
    $region39: #{tpu_custom_call.1} parent=1 // pred_check_branch
      %83 = sbr.rel (0) target = $region41
    $region40: #{tpu_custom_call.1} parent=1 // pred_region
      %84 = dma.done [#allocation7], 1024
    $region41: #{tpu_custom_call.1} parent=1 // pred_fallthru
      _
    // Predicated region
    $region42: #{tpu_custom_call.1} parent=1 // pred_check
      _
    $region43: #{tpu_custom_call.1} parent=1 // pred_check_branch
      %86 = sbr.rel (0) target = $region45
    $region44: #{tpu_custom_call.1} parent=1 // pred_region
      %87 = dma.done [#allocation10], 8192
    $region45: #{tpu_custom_call.1} parent=1 // pred_fallthru
      _
    // Predicated region
    $region46: #{tpu_custom_call.1} parent=1 // pred_check
      _
    $region47: #{tpu_custom_call.1} parent=1 // pred_check_branch
      %89 = sbr.rel (0) target = $region49
    $region48: #{tpu_custom_call.1} parent=1 // pred_region
      %90 = dma.done [#allocation10], 8192
    $region49: #{tpu_custom_call.1} parent=1 // pred_fallthru
      _
    %p91 = scmp.eq.s32.totalorder 0, 0
    // Predicated region
    $region50: #{tpu_custom_call.1} parent=1 // pred_check
      %p92 = pneg %p91
    $region51: #{tpu_custom_call.1} parent=1 // pred_check_branch
      %94 = sbr.rel (%p92) target = $region53
    $region52: #{tpu_custom_call.1} parent=1 // pred_region
      %v95 = vld [vmem:[#allocation6] sm:$0xff]
      %v96 = vld [vmem:[#allocation6 + $0x8] sm:$0xff]
      %97 = vst [vmem:[#allocation2] sm:$0xff] %v95
      %98 = vst [vmem:[#allocation2 + $0x8] sm:$0xff] %v96
    $region53: #{tpu_custom_call.1} parent=1 // pred_fallthru
      _
    %v99 = vld [vmem:[#allocation3] sm:$0xff]
    %v100 = vld [vmem:[#allocation2] sm:$0xff]
    %v101 = vld [vmem:[#allocation2 + $0x8] sm:$0xff]
    %v102 = vld [vmem:[#allocation8] sm:$0xff]
    %v103 = vld [vmem:[#allocation8 + $0x8] sm:$0xff]
    %v104 = vld [vmem:[#allocation8 + $0x10] sm:$0xff]
    %v105 = vld [vmem:[#allocation8 + $0x18] sm:$0xff]
    %v106 = vld [vmem:[#allocation8 + $0x20] sm:$0xff]
    %v107 = vld [vmem:[#allocation8 + $0x28] sm:$0xff]
    %v108 = vld [vmem:[#allocation8 + $0x30] sm:$0xff]
    %v109 = vld [vmem:[#allocation8 + $0x38] sm:$0xff]
    %vm110 = vcmask 130048
    %v112 = vsel %vm110, %v99, 0
    %114 = vmatprep.subr.mxu0 %v103
    %115 = vmatpush1.msra.mxu0 %v102
    %116 = vmatprep.subr.mxu0 %v107
    %117 = vmatpush1.msra.mxu0 %v106
    %118 = vmatprep.subr.mxu0 0.0
    %119 = vmatpush1.msra.mxu0 0.0
    %120 = vmatprep.subr.mxu0 0.0
    %121 = vmatpush1.msra.mxu0 0.0
    %122 = vmatprep.subr.mxu0 0.0
    %123 = vmatpush1.msra.mxu0 0.0
    %124 = vmatprep.subr.mxu0 0.0
    %125 = vmatpush1.msra.mxu0 0.0
    %126 = vmatprep.subr.mxu0 0.0
    %127 = vmatpush1.msra.mxu0 0.0
    %128 = vmatprep.subr.mxu0 0.0
    %129 = vmatpush1.msra.mxu0 0.0
    %130 = vmatprep.subr.mxu0 0.0
    %131 = vmatpush1.msra.mxu0 0.0
    %132 = vmatprep.subr.mxu0 0.0
    %133 = vmatpush1.msra.mxu0 0.0
    %134 = vmatprep.subr.mxu0 0.0
    %135 = vmatpush1.msra.mxu0 0.0
    %136 = vmatprep.subr.mxu0 0.0
    %137 = vmatpush1.msra.mxu0 0.0
    %138 = vmatprep.subr.mxu0 0.0
    %139 = vmatpush1.msra.mxu0 0.0
    %140 = vmatprep.subr.mxu0 0.0
    %141 = vmatpush1.msra.mxu0 0.0
    %142 = vmatprep.subr.mxu0 0.0
    %143 = vmatpush1.msra.mxu0 0.0
    %144 = vmatprep.subr.mxu0 0.0
    %145 = vmatpush1.msra.mxu0 0.0
    %146 = vmatprep.subr.mxu0 0.0
    %147 = vmatpush1.msra.mxu0 0.0
    %148 = vmatprep.subr.mxu0 0.0
    %149 = vmatpush1.msra.mxu0 0.0
    %150 = vmatprep.subr.mxu0 0.0
    %151 = vmatpush1.msra.mxu0 0.0
    %152 = vmatprep.subr.mxu0 0.0
    %153 = vmatpush1.msra.mxu0 0.0
    %154 = vmatprep.subr.mxu0 0.0
    %155 = vmatpush1.msra.mxu0 0.0
    %156 = vmatprep.subr.mxu0 0.0
    %157 = vmatpush1.msra.mxu0 0.0
    %158 = vmatprep.subr.mxu0 0.0
    %159 = vmatpush1.msra.mxu0 0.0
    %160 = vmatprep.subr.mxu0 0.0
    %161 = vmatpush1.msra.mxu0 0.0
    %162 = vmatprep.subr.mxu0 0.0
    %163 = vmatpush1.msra.mxu0 0.0
    %164 = vmatprep.subr.mxu0 0.0
    %165 = vmatpush1.msra.mxu0 0.0
    %166 = vmatprep.subr.mxu0 0.0
    %167 = vmatpush1.msra.mxu0 0.0
    %168 = vmatprep.subr.mxu0 0.0
    %169 = vmatpush1.msra.mxu0 0.0
    %170 = vmatprep.subr.mxu0 0.0
    %171 = vmatpush1.msra.mxu0 0.0
    %172 = vmatprep.subr.mxu0 0.0
    %173 = vmatpush1.msra.mxu0 0.0
    %174 = vmatprep.subr.mxu0 0.0
    %175 = vmatpush1.msra.mxu0 0.0
    %176 = vmatprep.subr.mxu0 0.0
    %177 = vmatpush1.msra.mxu0 0.0
    %178 = vmatprep.mubr.f32.mxu0 0.0
    %179 = vmatmul.mubr.f32.gmra.mrb[0].mxu0 %v112
    %v180 = vpop.f32.mrb[0].mxu0
    %v181 = vadd.f32 0.0, %v180
    %v182 = vpop.f32.mrb[0].mxu0
    %v183 = vadd.f32 0.0, %v182
    %184 = vdwg.mxu0
    %185 = vmatprep.subr.mxu0 %v105
    %186 = vmatpush1.msra.mxu0 %v104
    %187 = vmatprep.subr.mxu0 %v109
    %188 = vmatpush1.msra.mxu0 %v108
    %189 = vmatprep.subr.mxu0 0.0
    %190 = vmatpush1.msra.mxu0 0.0
    %191 = vmatprep.subr.mxu0 0.0
    %192 = vmatpush1.msra.mxu0 0.0
    %193 = vmatprep.subr.mxu0 0.0
    %194 = vmatpush1.msra.mxu0 0.0
    %195 = vmatprep.subr.mxu0 0.0
    %196 = vmatpush1.msra.mxu0 0.0
    %197 = vmatprep.subr.mxu0 0.0
    %198 = vmatpush1.msra.mxu0 0.0
    %199 = vmatprep.subr.mxu0 0.0
    %200 = vmatpush1.msra.mxu0 0.0
    %201 = vmatprep.subr.mxu0 0.0
    %202 = vmatpush1.msra.mxu0 0.0
    %203 = vmatprep.subr.mxu0 0.0
    %204 = vmatpush1.msra.mxu0 0.0
    %205 = vmatprep.subr.mxu0 0.0
    %206 = vmatpush1.msra.mxu0 0.0
    %207 = vmatprep.subr.mxu0 0.0
    %208 = vmatpush1.msra.mxu0 0.0
    %209 = vmatprep.subr.mxu0 0.0
    %210 = vmatpush1.msra.mxu0 0.0
    %211 = vmatprep.subr.mxu0 0.0
    %212 = vmatpush1.msra.mxu0 0.0
    %213 = vmatprep.subr.mxu0 0.0
    %214 = vmatpush1.msra.mxu0 0.0
    %215 = vmatprep.subr.mxu0 0.0
    %216 = vmatpush1.msra.mxu0 0.0
    %217 = vmatprep.subr.mxu0 0.0
    %218 = vmatpush1.msra.mxu0 0.0
    %219 = vmatprep.subr.mxu0 0.0
    %220 = vmatpush1.msra.mxu0 0.0
    %221 = vmatprep.subr.mxu0 0.0
    %222 = vmatpush1.msra.mxu0 0.0
    %223 = vmatprep.subr.mxu0 0.0
    %224 = vmatpush1.msra.mxu0 0.0
    %225 = vmatprep.subr.mxu0 0.0
    %226 = vmatpush1.msra.mxu0 0.0
    %227 = vmatprep.subr.mxu0 0.0
    %228 = vmatpush1.msra.mxu0 0.0
    %229 = vmatprep.subr.mxu0 0.0
    %230 = vmatpush1.msra.mxu0 0.0
    %231 = vmatprep.subr.mxu0 0.0
    %232 = vmatpush1.msra.mxu0 0.0
    %233 = vmatprep.subr.mxu0 0.0
    %234 = vmatpush1.msra.mxu0 0.0
    %235 = vmatprep.subr.mxu0 0.0
    %236 = vmatpush1.msra.mxu0 0.0
    %237 = vmatprep.subr.mxu0 0.0
    %238 = vmatpush1.msra.mxu0 0.0
    %239 = vmatprep.subr.mxu0 0.0
    %240 = vmatpush1.msra.mxu0 0.0
    %241 = vmatprep.subr.mxu0 0.0
    %242 = vmatpush1.msra.mxu0 0.0
    %243 = vmatprep.subr.mxu0 0.0
    %244 = vmatpush1.msra.mxu0 0.0
    %245 = vmatprep.subr.mxu0 0.0
    %246 = vmatpush1.msra.mxu0 0.0
    %247 = vmatprep.subr.mxu0 0.0
    %248 = vmatpush1.msra.mxu0 0.0
    %249 = vmatprep.mubr.f32.mxu0 0.0
    %250 = vmatmul.mubr.f32.gmra.mrb[0].mxu0 %v112
    %v251 = vpop.f32.mrb[0].mxu0
    %v252 = vadd.f32 0.0, %v251
    %v253 = vpop.f32.mrb[0].mxu0
    %v254 = vadd.f32 0.0, %v253
    %255 = vdwg.mxu0
    %v256 = vld [vmem:[#allocation9] sm:$0xff]
    %v257 = vld [vmem:[#allocation9 + $0x8] sm:$0xff]
    %v258 = vld [vmem:[#allocation9 + $0x10] sm:$0xff]
    %v259 = vld [vmem:[#allocation9 + $0x18] sm:$0xff]
    %v260 = vld [vmem:[#allocation9 + $0x20] sm:$0xff]
    %v261 = vld [vmem:[#allocation9 + $0x28] sm:$0xff]
    %v262 = vld [vmem:[#allocation9 + $0x30] sm:$0xff]
    %v263 = vld [vmem:[#allocation9 + $0x38] sm:$0xff]
    %v264 = vld [vmem:[#allocation9 + $0x40] sm:$0xff]
    %v265 = vld [vmem:[#allocation9 + $0x48] sm:$0xff]
    %v266 = vld [vmem:[#allocation9 + $0x50] sm:$0xff]
    %v267 = vld [vmem:[#allocation9 + $0x58] sm:$0xff]
    %v268 = vld [vmem:[#allocation9 + $0x60] sm:$0xff]
    %v269 = vld [vmem:[#allocation9 + $0x68] sm:$0xff]
    %v270 = vld [vmem:[#allocation9 + $0x70] sm:$0xff]
    %v271 = vld [vmem:[#allocation9 + $0x78] sm:$0xff]
    %v272 = vld [vmem:[#allocation9 + $0x80] sm:$0xff]
    %v273 = vld [vmem:[#allocation9 + $0x88] sm:$0xff]
    %v274 = vld [vmem:[#allocation9 + $0x90] sm:$0xff]
    %v275 = vld [vmem:[#allocation9 + $0x98] sm:$0xff]
    %v276 = vld [vmem:[#allocation9 + $0xa0] sm:$0xff]
    %v277 = vld [vmem:[#allocation9 + $0xa8] sm:$0xff]
    %v278 = vld [vmem:[#allocation9 + $0xb0] sm:$0xff]
    %v279 = vld [vmem:[#allocation9 + $0xb8] sm:$0xff]
    %v280 = vld [vmem:[#allocation9 + $0xc0] sm:$0xff]
    %v281 = vld [vmem:[#allocation9 + $0xc8] sm:$0xff]
    %v282 = vld [vmem:[#allocation9 + $0xd0] sm:$0xff]
    %v283 = vld [vmem:[#allocation9 + $0xd8] sm:$0xff]
    %v284 = vld [vmem:[#allocation9 + $0xe0] sm:$0xff]
    %v285 = vld [vmem:[#allocation9 + $0xe8] sm:$0xff]
    %v286 = vld [vmem:[#allocation9 + $0xf0] sm:$0xff]
    %v287 = vld [vmem:[#allocation9 + $0xf8] sm:$0xff]
    %v288 = vld [vmem:[#allocation9 + $0x100] sm:$0xff]
    %v289 = vld [vmem:[#allocation9 + $0x108] sm:$0xff]
    %v290 = vld [vmem:[#allocation9 + $0x110] sm:$0xff]
    %v291 = vld [vmem:[#allocation9 + $0x118] sm:$0xff]
    %v292 = vld [vmem:[#allocation9 + $0x120] sm:$0xff]
    %v293 = vld [vmem:[#allocation9 + $0x128] sm:$0xff]
    %v294 = vld [vmem:[#allocation9 + $0x130] sm:$0xff]
    %v295 = vld [vmem:[#allocation9 + $0x138] sm:$0xff]
    %v296 = vld [vmem:[#allocation9 + $0x140] sm:$0xff]
    %v297 = vld [vmem:[#allocation9 + $0x148] sm:$0xff]
    %v298 = vld [vmem:[#allocation9 + $0x150] sm:$0xff]
    %v299 = vld [vmem:[#allocation9 + $0x158] sm:$0xff]
    %v300 = vld [vmem:[#allocation9 + $0x160] sm:$0xff]
    %v301 = vld [vmem:[#allocation9 + $0x168] sm:$0xff]
    %v302 = vld [vmem:[#allocation9 + $0x170] sm:$0xff]
    %v303 = vld [vmem:[#allocation9 + $0x178] sm:$0xff]
    %v304 = vld [vmem:[#allocation9 + $0x180] sm:$0xff]
    %v305 = vld [vmem:[#allocation9 + $0x188] sm:$0xff]
    %v306 = vld [vmem:[#allocation9 + $0x190] sm:$0xff]
    %v307 = vld [vmem:[#allocation9 + $0x198] sm:$0xff]
    %v308 = vld [vmem:[#allocation9 + $0x1a0] sm:$0xff]
    %v309 = vld [vmem:[#allocation9 + $0x1a8] sm:$0xff]
    %v310 = vld [vmem:[#allocation9 + $0x1b0] sm:$0xff]
    %v311 = vld [vmem:[#allocation9 + $0x1b8] sm:$0xff]
    %v312 = vld [vmem:[#allocation9 + $0x1c0] sm:$0xff]
    %v313 = vld [vmem:[#allocation9 + $0x1c8] sm:$0xff]
    %v314 = vld [vmem:[#allocation9 + $0x1d0] sm:$0xff]
    %v315 = vld [vmem:[#allocation9 + $0x1d8] sm:$0xff]
    %v316 = vld [vmem:[#allocation9 + $0x1e0] sm:$0xff]
    %v317 = vld [vmem:[#allocation9 + $0x1e8] sm:$0xff]
    %v318 = vld [vmem:[#allocation9 + $0x1f0] sm:$0xff]
    %v319 = vld [vmem:[#allocation9 + $0x1f8] sm:$0xff]
    %320 = vmatprep.subr.mxu0 %v257
    %321 = vmatpush1.msra.mxu0 %v256
    %322 = vmatprep.subr.mxu0 %v259
    %323 = vmatpush1.msra.mxu0 %v258
    %324 = vmatprep.subr.mxu0 %v261
    %325 = vmatpush1.msra.mxu0 %v260
    %326 = vmatprep.subr.mxu0 %v263
    %327 = vmatpush1.msra.mxu0 %v262
    %328 = vmatprep.subr.mxu0 %v265
    %329 = vmatpush1.msra.mxu0 %v264
    %330 = vmatprep.subr.mxu0 %v267
    %331 = vmatpush1.msra.mxu0 %v266
    %332 = vmatprep.subr.mxu0 %v269
    %333 = vmatpush1.msra.mxu0 %v268
    %334 = vmatprep.subr.mxu0 %v271
    %335 = vmatpush1.msra.mxu0 %v270
    %336 = vmatprep.subr.mxu0 %v273
    %337 = vmatpush1.msra.mxu0 %v272
    %338 = vmatprep.subr.mxu0 %v275
    %339 = vmatpush1.msra.mxu0 %v274
    %340 = vmatprep.subr.mxu0 %v277
    %341 = vmatpush1.msra.mxu0 %v276
    %342 = vmatprep.subr.mxu0 %v279
    %343 = vmatpush1.msra.mxu0 %v278
    %344 = vmatprep.subr.mxu0 %v281
    %345 = vmatpush1.msra.mxu0 %v280
    %346 = vmatprep.subr.mxu0 %v283
    %347 = vmatpush1.msra.mxu0 %v282
    %348 = vmatprep.subr.mxu0 %v285
    %349 = vmatpush1.msra.mxu0 %v284
    %350 = vmatprep.subr.mxu0 %v287
    %351 = vmatpush1.msra.mxu0 %v286
    %352 = vmatprep.subr.mxu0 %v289
    %353 = vmatpush1.msra.mxu0 %v288
    %354 = vmatprep.subr.mxu0 %v291
    %355 = vmatpush1.msra.mxu0 %v290
    %356 = vmatprep.subr.mxu0 %v293
    %357 = vmatpush1.msra.mxu0 %v292
    %358 = vmatprep.subr.mxu0 %v295
    %359 = vmatpush1.msra.mxu0 %v294
    %360 = vmatprep.subr.mxu0 %v297
    %361 = vmatpush1.msra.mxu0 %v296
    %362 = vmatprep.subr.mxu0 %v299
    %363 = vmatpush1.msra.mxu0 %v298
    %364 = vmatprep.subr.mxu0 %v301
    %365 = vmatpush1.msra.mxu0 %v300
    %366 = vmatprep.subr.mxu0 %v303
    %367 = vmatpush1.msra.mxu0 %v302
    %368 = vmatprep.subr.mxu0 %v305
    %369 = vmatpush1.msra.mxu0 %v304
    %370 = vmatprep.subr.mxu0 %v307
    %371 = vmatpush1.msra.mxu0 %v306
    %372 = vmatprep.subr.mxu0 %v309
    %373 = vmatpush1.msra.mxu0 %v308
    %374 = vmatprep.subr.mxu0 %v311
    %375 = vmatpush1.msra.mxu0 %v310
    %376 = vmatprep.subr.mxu0 %v313
    %377 = vmatpush1.msra.mxu0 %v312
    %378 = vmatprep.subr.mxu0 %v315
    %379 = vmatpush1.msra.mxu0 %v314
    %380 = vmatprep.subr.mxu0 %v317
    %381 = vmatpush1.msra.mxu0 %v316
    %382 = vmatprep.subr.mxu0 %v319
    %383 = vmatpush1.msra.mxu0 %v318
    %384 = vmatprep.mubr.f32.mxu0 %v101
    %385 = vmatmul.mubr.f32.gmra.mrb[0].mxu0 %v100
    %v386 = vpop.f32.mrb[0].mxu0
    %v387 = vadd.f32 0.0, %v386
    %v388 = vpop.f32.mrb[0].mxu0
    %v389 = vadd.f32 0.0, %v388
    %390 = vdwg.mxu0
    %v391 = vld [vmem:[%s3] sm:$0x3]
    %v393 = vlaneseq
    %v394 = vshrl.u32 %v393, 7
    %v395 = vsub.s32 0, %v394
    %v396 = vrot.slane %v391, %v395
    %v397 = vlaneseq
    %v398 = vshrl.u32 %v397, 7
    %v399 = vsub.s32 1, %v398
    %v400 = vrot.slane %v391, %v399
    %v403 = vadd.f32 %v181, %v396
    %v404 = vadd.f32 %v183, %v400
    %v405 = vadd.f32 %v403, %v387
    %v406 = vadd.f32 %v404, %v389
    %v407 = vmax.f32 %v405, 0.0
    %v408 = vmax.f32 %v406, 0.0
    %v409 = vadd.f32 %v407, %v252
    %v410 = vadd.f32 %v408, %v254
    %v411 = vmax.f32 %v409, 0.0
    %v412 = vmax.f32 %v410, 0.0
    %v413 = vld [vmem:[#allocation11] sm:$0xff]
    %v414 = vld [vmem:[#allocation11 + $0x8] sm:$0xff]
    %v415 = vld [vmem:[#allocation11 + $0x10] sm:$0xff]
    %v416 = vld [vmem:[#allocation11 + $0x18] sm:$0xff]
    %v417 = vld [vmem:[#allocation11 + $0x20] sm:$0xff]
    %v418 = vld [vmem:[#allocation11 + $0x28] sm:$0xff]
    %v419 = vld [vmem:[#allocation11 + $0x30] sm:$0xff]
    %v420 = vld [vmem:[#allocation11 + $0x38] sm:$0xff]
    %v421 = vld [vmem:[#allocation11 + $0x40] sm:$0xff]
    %v422 = vld [vmem:[#allocation11 + $0x48] sm:$0xff]
    %v423 = vld [vmem:[#allocation11 + $0x50] sm:$0xff]
    %v424 = vld [vmem:[#allocation11 + $0x58] sm:$0xff]
    %v425 = vld [vmem:[#allocation11 + $0x60] sm:$0xff]
    %v426 = vld [vmem:[#allocation11 + $0x68] sm:$0xff]
    %v427 = vld [vmem:[#allocation11 + $0x70] sm:$0xff]
    %v428 = vld [vmem:[#allocation11 + $0x78] sm:$0xff]
    %v429 = vld [vmem:[#allocation11 + $0x80] sm:$0xff]
    %v430 = vld [vmem:[#allocation11 + $0x88] sm:$0xff]
    %v431 = vld [vmem:[#allocation11 + $0x90] sm:$0xff]
    %v432 = vld [vmem:[#allocation11 + $0x98] sm:$0xff]
    %v433 = vld [vmem:[#allocation11 + $0xa0] sm:$0xff]
    %v434 = vld [vmem:[#allocation11 + $0xa8] sm:$0xff]
    %v435 = vld [vmem:[#allocation11 + $0xb0] sm:$0xff]
    %v436 = vld [vmem:[#allocation11 + $0xb8] sm:$0xff]
    %v437 = vld [vmem:[#allocation11 + $0xc0] sm:$0xff]
    %v438 = vld [vmem:[#allocation11 + $0xc8] sm:$0xff]
    %v439 = vld [vmem:[#allocation11 + $0xd0] sm:$0xff]
    %v440 = vld [vmem:[#allocation11 + $0xd8] sm:$0xff]
    %v441 = vld [vmem:[#allocation11 + $0xe0] sm:$0xff]
    %v442 = vld [vmem:[#allocation11 + $0xe8] sm:$0xff]
    %v443 = vld [vmem:[#allocation11 + $0xf0] sm:$0xff]
    %v444 = vld [vmem:[#allocation11 + $0xf8] sm:$0xff]
    %v445 = vld [vmem:[#allocation11 + $0x100] sm:$0xff]
    %v446 = vld [vmem:[#allocation11 + $0x108] sm:$0xff]
    %v447 = vld [vmem:[#allocation11 + $0x110] sm:$0xff]
    %v448 = vld [vmem:[#allocation11 + $0x118] sm:$0xff]
    %v449 = vld [vmem:[#allocation11 + $0x120] sm:$0xff]
    %v450 = vld [vmem:[#allocation11 + $0x128] sm:$0xff]
    %v451 = vld [vmem:[#allocation11 + $0x130] sm:$0xff]
    %v452 = vld [vmem:[#allocation11 + $0x138] sm:$0xff]
    %v453 = vld [vmem:[#allocation11 + $0x140] sm:$0xff]
    %v454 = vld [vmem:[#allocation11 + $0x148] sm:$0xff]
    %v455 = vld [vmem:[#allocation11 + $0x150] sm:$0xff]
    %v456 = vld [vmem:[#allocation11 + $0x158] sm:$0xff]
    %v457 = vld [vmem:[#allocation11 + $0x160] sm:$0xff]
    %v458 = vld [vmem:[#allocation11 + $0x168] sm:$0xff]
    %v459 = vld [vmem:[#allocation11 + $0x170] sm:$0xff]
    %v460 = vld [vmem:[#allocation11 + $0x178] sm:$0xff]
    %v461 = vld [vmem:[#allocation11 + $0x180] sm:$0xff]
    %v462 = vld [vmem:[#allocation11 + $0x188] sm:$0xff]
    %v463 = vld [vmem:[#allocation11 + $0x190] sm:$0xff]
    %v464 = vld [vmem:[#allocation11 + $0x198] sm:$0xff]
    %v465 = vld [vmem:[#allocation11 + $0x1a0] sm:$0xff]
    %v466 = vld [vmem:[#allocation11 + $0x1a8] sm:$0xff]
    %v467 = vld [vmem:[#allocation11 + $0x1b0] sm:$0xff]
    %v468 = vld [vmem:[#allocation11 + $0x1b8] sm:$0xff]
    %v469 = vld [vmem:[#allocation11 + $0x1c0] sm:$0xff]
    %v470 = vld [vmem:[#allocation11 + $0x1c8] sm:$0xff]
    %v471 = vld [vmem:[#allocation11 + $0x1d0] sm:$0xff]
    %v472 = vld [vmem:[#allocation11 + $0x1d8] sm:$0xff]
    %v473 = vld [vmem:[#allocation11 + $0x1e0] sm:$0xff]
    %v474 = vld [vmem:[#allocation11 + $0x1e8] sm:$0xff]
    %v475 = vld [vmem:[#allocation11 + $0x1f0] sm:$0xff]
    %v476 = vld [vmem:[#allocation11 + $0x1f8] sm:$0xff]
    %v477 = vld [vmem:[%s6] sm:$0x3]
    %v479 = vlaneseq
    %v480 = vshrl.u32 %v479, 7
    %v481 = vsub.s32 0, %v480
    %v482 = vrot.slane %v477, %v481
    %v483 = vlaneseq
    %v484 = vshrl.u32 %v483, 7
    %v485 = vsub.s32 1, %v484
    %v486 = vrot.slane %v477, %v485
    %489 = vmatprep.subr.mxu0 %v414
    %490 = vmatpush1.msra.mxu0 %v413
    %491 = vmatprep.subr.mxu0 %v416
    %492 = vmatpush1.msra.mxu0 %v415
    %493 = vmatprep.subr.mxu0 %v418
    %494 = vmatpush1.msra.mxu0 %v417
    %495 = vmatprep.subr.mxu0 %v420
    %496 = vmatpush1.msra.mxu0 %v419
    %497 = vmatprep.subr.mxu0 %v422
    %498 = vmatpush1.msra.mxu0 %v421
    %499 = vmatprep.subr.mxu0 %v424
    %500 = vmatpush1.msra.mxu0 %v423
    %501 = vmatprep.subr.mxu0 %v426
    %502 = vmatpush1.msra.mxu0 %v425
    %503 = vmatprep.subr.mxu0 %v428
    %504 = vmatpush1.msra.mxu0 %v427
    %505 = vmatprep.subr.mxu0 %v430
    %506 = vmatpush1.msra.mxu0 %v429
    %507 = vmatprep.subr.mxu0 %v432
    %508 = vmatpush1.msra.mxu0 %v431
    %509 = vmatprep.subr.mxu0 %v434
    %510 = vmatpush1.msra.mxu0 %v433
    %511 = vmatprep.subr.mxu0 %v436
    %512 = vmatpush1.msra.mxu0 %v435
    %513 = vmatprep.subr.mxu0 %v438
    %514 = vmatpush1.msra.mxu0 %v437
    %515 = vmatprep.subr.mxu0 %v440
    %516 = vmatpush1.msra.mxu0 %v439
    %517 = vmatprep.subr.mxu0 %v442
    %518 = vmatpush1.msra.mxu0 %v441
    %519 = vmatprep.subr.mxu0 %v444
    %520 = vmatpush1.msra.mxu0 %v443
    %521 = vmatprep.subr.mxu0 %v446
    %522 = vmatpush1.msra.mxu0 %v445
    %523 = vmatprep.subr.mxu0 %v448
    %524 = vmatpush1.msra.mxu0 %v447
    %525 = vmatprep.subr.mxu0 %v450
    %526 = vmatpush1.msra.mxu0 %v449
    %527 = vmatprep.subr.mxu0 %v452
    %528 = vmatpush1.msra.mxu0 %v451
    %529 = vmatprep.subr.mxu0 %v454
    %530 = vmatpush1.msra.mxu0 %v453
    %531 = vmatprep.subr.mxu0 %v456
    %532 = vmatpush1.msra.mxu0 %v455
    %533 = vmatprep.subr.mxu0 %v458
    %534 = vmatpush1.msra.mxu0 %v457
    %535 = vmatprep.subr.mxu0 %v460
    %536 = vmatpush1.msra.mxu0 %v459
    %537 = vmatprep.subr.mxu0 %v462
    %538 = vmatpush1.msra.mxu0 %v461
    %539 = vmatprep.subr.mxu0 %v464
    %540 = vmatpush1.msra.mxu0 %v463
    %541 = vmatprep.subr.mxu0 %v466
    %542 = vmatpush1.msra.mxu0 %v465
    %543 = vmatprep.subr.mxu0 %v468
    %544 = vmatpush1.msra.mxu0 %v467
    %545 = vmatprep.subr.mxu0 %v470
    %546 = vmatpush1.msra.mxu0 %v469
    %547 = vmatprep.subr.mxu0 %v472
    %548 = vmatpush1.msra.mxu0 %v471
    %549 = vmatprep.subr.mxu0 %v474
    %550 = vmatpush1.msra.mxu0 %v473
    %551 = vmatprep.subr.mxu0 %v476
    %552 = vmatpush1.msra.mxu0 %v475
    %553 = vmatprep.mubr.f32.mxu0 %v412
    %554 = vmatmul.mubr.f32.gmra.mrb[0].mxu0 %v411
    %v555 = vpop.f32.mrb[0].mxu0
    %v556 = vadd.f32 %v482, %v555
    %v557 = vpop.f32.mrb[0].mxu0
    %v558 = vadd.f32 %v486, %v557
    %559 = vdwg.mxu0
    %560 = vst [vmem:[#allocation12] sm:$0xff] %v556
    %561 = vst [vmem:[#allocation12 + $0x8] sm:$0xff] %v558
    %562 = vst [vmem:[#allocation2] sm:$0xff] %v556
    %563 = vst [vmem:[#allocation2 + $0x8] sm:$0xff] %v558
    // Predicated region
    $region54: #{tpu_custom_call.1} parent=1 // pred_check
      _
    $region55: #{tpu_custom_call.1} parent=1 // pred_check_branch
      %565 = sbr.rel (0) target = $region57
    $region56: #{tpu_custom_call.1} parent=1 // pred_region
      %s567 = ssub.s32 256, 256
      %568 = vsyncadd [#allocation5], %s567
      %s570 = sshll.u32 [#allocation12], 4
      %s571 = int_to_ptr.vmem [resolvable:$true] %s570
      %573 = dma.vmem_to_hbm [thread:$0]  %s571, 256, %s7, [#allocation5]
    $region57: #{tpu_custom_call.1} parent=1 // pred_fallthru
      _
    // Predicated region
    $region58: #{tpu_custom_call.1} parent=1 // pred_check
      _
    $region59: #{tpu_custom_call.1} parent=1 // pred_check_branch
      %575 = sbr.rel (0) target = $region61
    $region60: #{tpu_custom_call.1} parent=1 // pred_region
      %576 = dma.done [#allocation5], 256
    $region61: #{tpu_custom_call.1} parent=1 // pred_fallthru
      _
    %577 = vsyncpa [#allocation4], 1
    %578 = vsyncpa [#allocation7], 1
    %579 = vsyncpa [#allocation10], 1
    %580 = vsyncpa [#allocation5], 1

</llo_original>
